<compile_context>
chip_gen: v5e
topology: v5e:2x2
jax: 0.10.0
libtpu: 0.0.40
codegen_flags: <defaults>
</compile_context>

<pallas_src>
import jax
import jax.numpy as jnp
from jax.experimental import pallas as pl
from jax.experimental.pallas import tpu as pltpu


def _identity_dma_kernel(y_hbm, o_hbm, sem):
    # Single HBM -> HBM DMA: the whole identity copy in one descriptor.
    cp = pltpu.make_async_copy(y_hbm, o_hbm, sem)
    cp.start()
    cp.wait()


def _pallas_identity(y: jax.Array) -> jax.Array:
    """Identity via one HBM->HBM DMA (no grid, no VMEM staging, no padding)."""
    nbytes = y.size * y.dtype.itemsize
    return pl.pallas_call(
        _identity_dma_kernel,
        out_shape=jax.ShapeDtypeStruct(y.shape, y.dtype),
        in_specs=[pl.BlockSpec(memory_space=pl.ANY)],
        out_specs=pl.BlockSpec(memory_space=pl.ANY),
        scratch_shapes=[pltpu.SemaphoreType.DMA],
        cost_estimate=pl.CostEstimate(
            flops=0, transcendentals=0, bytes_accessed=2 * nbytes),
    )(y)


def g_identity_forward(y: jax.Array, *, force_pallas: bool = False) -> jax.Array:
    """Pallas implementation of g_identity.forward(y) == y."""
    # For a pure identity, returning y is always fastest (zero HBM traffic
    # under jit). Only take the Pallas path when a kernel boundary is
    # genuinely required.
    if not force_pallas:
        return y
    return _pallas_identity(y)


def init_params(key: jax.Array):
    """Deterministic init of the (unused) fc = nn.Linear(1, 1, bias=False)."""
    # PyTorch default init: U(-1/sqrt(fan_in), 1/sqrt(fan_in)) with fan_in = 1.
    w = jax.random.uniform(key, (1, 1), dtype=jnp.float32, minval=-1.0, maxval=1.0)
    return {"fc_weight": w}  # note: never used in the forward pass


if __name__ == "__main__":
    key = jax.random.PRNGKey(0)
    k_param, k_small, k_big = jax.random.split(key, 3)

    params = init_params(k_param)  # unused, mirrors the module __init__

    # 1) Tiny input consistent with the module family's vector-style usage
    #    (batch=2, features=16): fast path, no kernel launch.
    y_small = jax.random.normal(k_small, (2, 16), dtype=jnp.float32)
    out_small = jax.block_until_ready(g_identity_forward(y_small))
    assert out_small.shape == y_small.shape and out_small.dtype == y_small.dtype
    assert bool(jnp.array_equal(out_small, y_small))

    # 2) Same tiny input forced through the Pallas HBM->HBM DMA path.
    out_small_k = jax.block_until_ready(
        g_identity_forward(y_small, force_pallas=True))
    assert out_small_k.shape == y_small.shape and out_small_k.dtype == y_small.dtype
    assert bool(jnp.array_equal(out_small_k, y_small))

    # 3) Modest 2-D input through the same DMA path (no tiling needed).
    y_big = jax.random.normal(k_big, (256, 128), dtype=jnp.float32)
    out_big = jax.block_until_ready(g_identity_forward(y_big, force_pallas=True))
    assert out_big.shape == y_big.shape and out_big.dtype == y_big.dtype
    assert bool(jnp.array_equal(out_big, y_big))

    print("KERNEL_OK")
</pallas_src>

<mosaic_0001>
module attributes {stable_mosaic.version = 11 : i64} {
  func.func @_identity_dma_kernel(%arg0: memref<2x16xf32, #tpu.memory_space<any>>, %arg1: memref<2x16xf32, #tpu.memory_space<any>>, %arg2: memref<!tpu.dma_semaphore, #tpu.memory_space<semaphore_mem>>) attributes {dimension_semantics = [], scalar_prefetch = 0 : i64, scratch_operands = 1 : i64, tpu.core_type = #tpu.core_type<tc>} {
    tpu.enqueue_dma source(%arg0 : memref<2x16xf32, #tpu.memory_space<any>>) target(%arg1 : memref<2x16xf32, #tpu.memory_space<any>>) target_semaphore(%arg2 : memref<!tpu.dma_semaphore, #tpu.memory_space<semaphore_mem>>)
    tpu.wait_dma2 semaphore(%arg2 : memref<!tpu.dma_semaphore, #tpu.memory_space<semaphore_mem>>) src(%arg0 : memref<2x16xf32, #tpu.memory_space<any>>) dst(%arg1 : memref<2x16xf32, #tpu.memory_space<any>>)
    return
  }
}

</mosaic_0001>

<llo_original>
// kernel: tpu_custom_call.1
$region0: #{tpu_custom_call.1}
  #allocation0 [shape = 'u32[]', space=smem, size = 0x4, offset = 0x4, fixed_abs, tag = 'smem constant byte address 0x4 - core index']
  #allocation1 [shape = 'u32[72,128]{1,0:T(1,128)}', space=vmem, size = 0x9000, scoped, tag = 'internal scratch']
  #allocation2 [shape = 's32[1]{0}', space=sflag, size = 0x4, scoped, tag = 'scratch operand']
  #allocation3 [shape = 's32[]', space=sflag, size = 0x4, offset = 0, fixed_abs, tag = 'sflag constant byte address 0x0 - dummy sync flag']
  #allocation4 [shape = 'u32[0]{0}', space=smem, size = 0, offset = 0, fixed_abs, tag = 'smem constant byte address 0x0 - null']
  %s0 = inlined_call_operand.hbm [shape: f32[2,16], index: 0, kind: input, shape index: {}]
  %s1 = inlined_call_operand.hbm [shape: f32[2,16], index: 1, kind: output, shape index: {}]
  %s2 = sld [smem:[#allocation0]]
  $region2: #{tpu_custom_call.1} parent=0
    _
  %s4 = ssub.s32 1, %s2
  %s5 = scalar_select 0, %s4, %s2
  %s7 = sshll.u32 1, 14
  %s8 = sxor.u32 4294967295, %s7
  %s10 = sshll.u32 %s0, 4
  %s11 = int_to_ptr.hbm [resolvable:$true] %s10
  %s12 = sshll.u32 %s1, 4
  %s13 = int_to_ptr.hbm [resolvable:$true] %s12
  %16 = dma.general %s11, 32, %s13, [#allocation2], [#allocation3], [#allocation4], 0, 0
  %s17 = smul.u32 2, 1
  %s18 = sshll.u32 %s17, 4
  %19 = dma.done [#allocation2], %s18
  %20 = vsyncmov [#allocation2]
  %s21 = vpop.sfrf %20
  %p22 = scmp.eq.s32.totalorder %s21, 0
  %p23 = pneg %p22
  %25 = shalt.err (%p23)

</llo_original>
